<compile_context>
chip_gen: v6e
topology: v6e:2x2x1
jax: 0.10.0
libtpu: 0.0.40
codegen_flags: <defaults>
</compile_context>

<pallas_src>
import jax
import jax.numpy as jnp
from jax.experimental import pallas as pl
from jax.experimental.pallas import tpu as pltpu

LANES = 128
HIDDEN = 3


def _perceptron_kernel(x_ref, w1_ref, w2_ref, b_ref, o_ref):
    # x_ref / o_ref: (tr, 128) lane-dense VMEM tiles (f32 or bf16 I/O).
    # w1_ref, w2_ref: (3,) f32 SMEM;  b_ref: (1,) f32 SMEM.
    x = x_ref[...].astype(jnp.float32)          # f32 compute everywhere (v5e-safe)
    acc = jnp.full_like(x, b_ref[0])            # broadcast bias once (hoisted)
    # Unrolled over the 3 hidden units: pure VPU (+EUP tanh), no MXU, no XLU.
    for j in range(HIDDEN):
        acc = acc + w2_ref[j] * jnp.tanh(w1_ref[j] * x)
    o_ref[...] = acc.astype(o_ref.dtype)


def perceptron_reference(x, w_in2h, w_h2out, b_h2out):
    xf = x.astype(jnp.float32)
    h = jnp.tanh(xf @ w_in2h.astype(jnp.float32).T)
    out = h @ w_h2out.astype(jnp.float32).T + b_h2out.astype(jnp.float32)[None, :]
    return out.astype(x.dtype)


def perceptron_forward(x, w_in2h, w_h2out, b_h2out, *,
                       tile_rows=1024,
                       min_pallas_n=16384,
                       lane_dense_output=False):
    """Perceptron forward.  x: (N, 1) f32 or bf16.

    Returns (N, 1) in x.dtype, or, if lane_dense_output=True, the
    (ceil(N/128), 128) lane-dense slab plus N.  NOTE: padded lanes of the
    slab hold the bias value b (tanh(0)*w2 + b), NOT zero.
    """
    n = x.shape[0]
    io_dtype = jnp.bfloat16 if x.dtype == jnp.bfloat16 else jnp.float32

    # Small-N fallback: pad/reshape/slice HLOs + launch overhead dwarf the
    # <1 us of actual work; XLA fuses this into one elementwise pass anyway.
    if n < min_pallas_n and not lane_dense_output:
        return perceptron_reference(x.astype(io_dtype), w_in2h, w_h2out, b_h2out)

    sub = 16 if io_dtype == jnp.bfloat16 else 8   # min sublane multiple
    rows = pl.cdiv(n, LANES)                      # ragged last block handled by Pallas
    padded = rows * LANES

    # Lane-dense input slab.  Fast path: exact multiple of 128 -> reshape only.
    x_flat = x.reshape(-1).astype(io_dtype)
    if padded == n:
        x2d = x_flat.reshape(rows, LANES)
    else:
        x2d = jnp.pad(x_flat, (0, padded - n)).reshape(rows, LANES)

    # Tile rows: a multiple of `sub` (unless it spans the full extent), and
    # when there is enough work, capped so the grid has >= 2 steps so v7x's
    # two TensorCores both get a share (harmless on v5e/v6e).
    tr = min(tile_rows, rows)
    if rows >= 2 * sub:
        tr = min(tr, max(sub, (((rows + 1) // 2) // sub) * sub))
    if tr < rows:
        tr = max(sub, (tr // sub) * sub)
    grid = (pl.cdiv(rows, tr),)

    # Weights/bias as flat SMEM scalars (PyTorch Linear weight is (out, in)).
    w1 = w_in2h.reshape(HIDDEN).astype(jnp.float32)    # in2h.weight[:, 0]
    w2 = w_h2out.reshape(HIDDEN).astype(jnp.float32)   # h2out.weight[0, :]
    b = b_h2out.reshape(1).astype(jnp.float32)         # h2out.bias

    smem = pl.BlockSpec(memory_space=pltpu.MemorySpace.SMEM)
    tile_spec = pl.BlockSpec((tr, LANES), lambda i: (i, 0))
    itemsize = jnp.dtype(io_dtype).itemsize

    out2d = pl.pallas_call(
        _perceptron_kernel,
        out_shape=jax.ShapeDtypeStruct((rows, LANES), io_dtype),
        grid=grid,
        in_specs=[tile_spec, smem, smem, smem],
        out_specs=tile_spec,
        compiler_params=pltpu.CompilerParams(
            dimension_semantics=("parallel",),            # v7x 2-TC split
            allow_input_fusion=[True, False, False, False],  # fuse pad/reshape into the call
        ),
        cost_estimate=pl.CostEstimate(
            flops=9 * padded,
            transcendentals=3 * padded,
            bytes_accessed=2 * itemsize * padded),
    )(x2d, w1, w2, b)

    if lane_dense_output:
        return out2d, n                     # consumer takes the slab; no unpad pass
    if padded == n:
        return out2d.reshape(n, 1)          # layout-only
    # TODO(synk): this slice is a separate full HBM pass over the output;
    # prefer lane_dense_output=True when the consumer can take the slab.
    return out2d.reshape(-1)[:n].reshape(n, 1)


if __name__ == "__main__":
    key = jax.random.PRNGKey(0)
    kx, k1, k2, kb = jax.random.split(key, 4)

    # PyTorch Linear shapes: weight is (out_features, in_features).
    w_in2h = jax.random.normal(k1, (3, 1), dtype=jnp.float32) * 0.5
    w_h2out = jax.random.normal(k2, (1, 3), dtype=jnp.float32) * 0.5
    b_h2out = jax.random.normal(kb, (1,), dtype=jnp.float32) * 0.1

    # 1) Tiny batch (module-scale): exercises the small-N fallback path.
    x_small = jax.random.normal(kx, (8, 1), dtype=jnp.float32)
    out_s = jax.block_until_ready(
        perceptron_forward(x_small, w_in2h, w_h2out, b_h2out))
    ref_s = perceptron_reference(x_small, w_in2h, w_h2out, b_h2out)
    assert out_s.shape == (8, 1)
    assert jnp.allclose(out_s, ref_s, atol=1e-5, rtol=1e-5)

    # 2) Pallas path, ragged N: padding (<=127 elems), multi-block grid,
    #    ragged last block (N % 128 != 0, rows not a multiple of the tile).
    x_big = jax.random.normal(kx, (20000, 1), dtype=jnp.float32)
    out_b = jax.block_until_ready(
        perceptron_forward(x_big, w_in2h, w_h2out, b_h2out))
    ref_b = perceptron_reference(x_big, w_in2h, w_h2out, b_h2out)
    assert out_b.shape == (20000, 1)
    assert jnp.allclose(out_b, ref_b, atol=1e-5, rtol=1e-5)

    # 3) Pallas path, N an exact multiple of 128: pad-free / slice-free fast
    #    path, 2-step grid (forced past the small-N fallback).
    x_al = jax.random.normal(kx, (8192, 1), dtype=jnp.float32)
    out_a = jax.block_until_ready(
        perceptron_forward(x_al, w_in2h, w_h2out, b_h2out, min_pallas_n=0))
    ref_a = perceptron_reference(x_al, w_in2h, w_h2out, b_h2out)
    assert out_a.shape == (8192, 1)
    assert jnp.allclose(out_a, ref_a, atol=1e-5, rtol=1e-5)

    # 4) bf16 I/O variant (half the HBM bytes); compute stays f32 in-kernel.
    x_bf = x_al[:5000].astype(jnp.bfloat16)
    out_bf = jax.block_until_ready(
        perceptron_forward(x_bf, w_in2h, w_h2out, b_h2out, min_pallas_n=0))
    ref_bf = perceptron_reference(x_bf, w_in2h, w_h2out, b_h2out)
    assert out_bf.shape == (5000, 1) and out_bf.dtype == jnp.bfloat16
    assert jnp.allclose(out_bf.astype(jnp.float32),
                        ref_bf.astype(jnp.float32), atol=2e-2, rtol=2e-2)

    print("KERNEL_OK")
</pallas_src>

<mosaic_0001>
module attributes {stable_mosaic.version = 11 : i64} {
  func.func @_perceptron_kernel(%arg0: i32, %arg1: memref<72x128xf32, #tpu.memory_space<vmem>>, %arg2: memref<3xf32, #tpu.memory_space<smem>>, %arg3: memref<3xf32, #tpu.memory_space<smem>>, %arg4: memref<1xf32, #tpu.memory_space<smem>>, %arg5: memref<72x128xf32, #tpu.memory_space<vmem>>) attributes {dimension_semantics = [#tpu.dimension_semantics<parallel>], iteration_bounds = array<i64: 3>, scalar_prefetch = 0 : i64, scratch_operands = 0 : i64, tpu.core_type = #tpu.core_type<tc>, window_params = [{transform_indices = @transform_0, window_bounds = array<i64: 72, 128>}, {transform_indices = @transform_1, window_bounds = array<i64: 3>}, {transform_indices = @transform_2, window_bounds = array<i64: 3>}, {transform_indices = @transform_3, window_bounds = array<i64: 1>}, {transform_indices = @transform_4, window_bounds = array<i64: 72, 128>}]} {
    %c0 = arith.constant 0 : index
    %c0_0 = arith.constant 0 : index
    %0 = vector.load %arg1[%c0, %c0_0] : memref<72x128xf32, #tpu.memory_space<vmem>>, vector<72x128xf32>
    %c0_1 = arith.constant 0 : index
    %1 = memref.load %arg4[%c0_1] : memref<1xf32, #tpu.memory_space<smem>>
    %2 = vector.broadcast %1 : f32 to vector<72x128xf32>
    %c0_2 = arith.constant 0 : index
    %3 = memref.load %arg3[%c0_2] : memref<3xf32, #tpu.memory_space<smem>>
    %c0_3 = arith.constant 0 : index
    %4 = memref.load %arg2[%c0_3] : memref<3xf32, #tpu.memory_space<smem>>
    %5 = vector.broadcast %4 : f32 to vector<72x128xf32>
    %6 = arith.mulf %5, %0 : vector<72x128xf32>
    %7 = math.tanh %6 : vector<72x128xf32>
    %8 = vector.broadcast %3 : f32 to vector<72x128xf32>
    %9 = arith.mulf %8, %7 : vector<72x128xf32>
    %10 = arith.addf %2, %9 : vector<72x128xf32>
    %c1 = arith.constant 1 : index
    %11 = memref.load %arg3[%c1] : memref<3xf32, #tpu.memory_space<smem>>
    %c1_4 = arith.constant 1 : index
    %12 = memref.load %arg2[%c1_4] : memref<3xf32, #tpu.memory_space<smem>>
    %13 = vector.broadcast %12 : f32 to vector<72x128xf32>
    %14 = arith.mulf %13, %0 : vector<72x128xf32>
    %15 = math.tanh %14 : vector<72x128xf32>
    %16 = vector.broadcast %11 : f32 to vector<72x128xf32>
    %17 = arith.mulf %16, %15 : vector<72x128xf32>
    %18 = arith.addf %10, %17 : vector<72x128xf32>
    %c2 = arith.constant 2 : index
    %19 = memref.load %arg3[%c2] : memref<3xf32, #tpu.memory_space<smem>>
    %c2_5 = arith.constant 2 : index
    %20 = memref.load %arg2[%c2_5] : memref<3xf32, #tpu.memory_space<smem>>
    %21 = vector.broadcast %20 : f32 to vector<72x128xf32>
    %22 = arith.mulf %21, %0 : vector<72x128xf32>
    %23 = math.tanh %22 : vector<72x128xf32>
    %24 = vector.broadcast %19 : f32 to vector<72x128xf32>
    %25 = arith.mulf %24, %23 : vector<72x128xf32>
    %26 = arith.addf %18, %25 : vector<72x128xf32>
    %c0_6 = arith.constant 0 : index
    %c0_7 = arith.constant 0 : index
    %27 = vector.load %arg5[%c0_6, %c0_7] : memref<72x128xf32, #tpu.memory_space<vmem>>, vector<72x128xf32>
    tpu.vector_store %arg5[%c0_6, %c0_7], %26 {strides = array<i32>} : memref<72x128xf32, #tpu.memory_space<vmem>>, vector<72x128xf32>,
    return
  }
  func.func @transform_0(%arg0: i32) -> (i32, i32) {
    %c0_i32 = arith.constant 0 : i32
    %c0_i32_0 = arith.constant 0 : i32
    return %arg0, %c0_i32 : i32, i32
  }
  func.func @transform_1(%arg0: i32) -> i32 {
    %c0_i32 = arith.constant 0 : i32
    %c0_i32_0 = arith.constant 0 : i32
    return %c0_i32 : i32
  }
  func.func @transform_2(%arg0: i32) -> i32 {
    %c0_i32 = arith.constant 0 : i32
    %c0_i32_0 = arith.constant 0 : i32
    return %c0_i32 : i32
  }
  func.func @transform_3(%arg0: i32) -> i32 {
    %c0_i32 = arith.constant 0 : i32
    %c0_i32_0 = arith.constant 0 : i32
    return %c0_i32 : i32
  }
  func.func @transform_4(%arg0: i32) -> (i32, i32) {
    %c0_i32 = arith.constant 0 : i32
    %c0_i32_0 = arith.constant 0 : i32
    return %arg0, %c0_i32 : i32, i32
  }
}

</mosaic_0001>

<llo_original>
// kernel: tpu_custom_call.1
$region0: #{tpu_custom_call.1}
  #allocation0 [shape = 'u32[]', space=smem, size = 0x4, offset = 0x4, fixed_abs, tag = 'smem constant byte address 0x4 - core index']
  #allocation1 [shape = 'u32[144,128]{1,0:T(1,128)}', space=vmem, size = 0x12000, scoped, tag = 'internal scratch']
  #allocation2 [shape = 'f32[1]{0:T(128)S(6)}', space=smem, size = 0x200, scoped, tag = 'scoped memory for tpu_custom_call.1']
  %s0 = inlined_call_operand.hbm [shape: f32[157,128], index: 0, kind: input, shape index: {}]
  %s1 = inlined_call_operand.vmem [shape: f32[3], index: 1, kind: input, shape index: {}]
  %s2 = inlined_call_operand.vmem [shape: f32[3], index: 2, kind: input, shape index: {}]
  %s3 = inlined_call_operand.<no memory space> [shape: f32[1], index: 3, kind: input, shape index: {}]
  %s4 = inlined_call_operand.hbm [shape: f32[157,128], index: 4, kind: output, shape index: {}]
  %s5 = sld [smem:[#allocation0]]
  $region61: #{tpu_custom_call.1} parent=0
    _
  %s7 = ssub.s32 1, %s5
  %s8 = scalar_select 0, %s7, %s5
  %9 = sst [smem:[#allocation2]] %s3
  $region1: #{tpu_custom_call.1} parent=0
    #allocation3 [shape = 'u8[73728]{0}', space=vmem, size = 0x12000, scoped, tag = 'input window, operand 0']
    #allocation4 [shape = 's32[2]{0}', space=sflag, size = 0x8, scoped, tag = 'scoped memory for tpu_custom_call.1']
    #allocation5 [shape = 's32[2]{0}', space=sflag, size = 0x8, scoped, tag = 'scoped memory for tpu_custom_call.1']
    #allocation6 [shape = 's32[2]{0}', space=sflag, size = 0x8, scoped, tag = 'scoped memory for tpu_custom_call.1']
    #allocation7 [shape = 'u8[512]{0}', space=smem, size = 0x200, scoped, tag = 'input window, operand 1, single buffered']
    #allocation8 [shape = 'u8[512]{0}', space=smem, size = 0x200, scoped, tag = 'input window, operand 2, single buffered']
    #allocation9 [shape = 's32[1]{0}', space=sflag, size = 0x4, scoped, tag = 'scoped memory for tpu_custom_call.1']
    #allocation10 [shape = 'u8[73728]{0}', space=vmem, size = 0x12000, scoped, tag = 'output window, operand 0']
    %10 = vsyncpa [#allocation4], 0
    %s11 = scalar_lea.sflag [#allocation4], 1
    %12 = vsyncpa %s11, 0
    %13 = vsyncpa [#allocation6], 0
    %14 = vsyncpa [#allocation9], 0
    %15 = vsyncpa [#allocation5], 0
    %s16 = scalar_lea.sflag [#allocation5], 1
    %17 = vsyncpa %s16, 0
    loop: start=0, step=1, limit=5
    $region2: #{tpu_custom_call.1} parent=1 // loop_pre_header
      _
    $region3: #{tpu_custom_call.1} parent=1 // loop_header
      %s19 = sphi 0, %s23
      %p20 = scmp.ge.s32.totalorder %s19, 5
      %s29 = sphi 0, %s31
      %s32 = sphi 0, %s29
      %s33 = sphi 0, %s32
      %s49 = sphi 0, %s33
      %s53 = sphi 0, %s53
      %s55 = sphi 0, %s53
      %s56 = sphi 0, %s55
      %s70 = sphi 0, %s56
      %s74 = sphi 0, %s74
      %s76 = sphi 0, %s74
      %s77 = sphi 0, %s76
      %s91 = sphi 0, %s77
      %s95 = sphi 0, %s95
      %s97 = sphi 0, %s95
      %s98 = sphi 0, %s97
      %s112 = sphi 0, %s98
      %s118 = sphi 0, %s120
      %s121 = sphi 0, %s118
      %s122 = sphi 0, %s121
      %s138 = sphi 0, %s122
    $region4: #{tpu_custom_call.1} parent=1 // loop_header_branch
      %22 = sbr.rel (%p20) target = $region8
    $region5: #{tpu_custom_call.1} parent=1 // loop_body
      %s24 = ssub.s32 %s19, 1
      %s25 = ssub.s32 %s19, 2
      %s26 = sadd.s32 %s19, 1
      %s27 = ssub.s32 %s19, %s26
      %p28 = scmp.eq.s32.totalorder %s27, 0
      %s30 = sadd.s32 %s29, 1
      %s31 = scalar_select %p28, %s29, %s30
      %p34 = pneg %p28
      %p35 = scmp.eq.s32.totalorder %s19, 2
      %p36 = por %p34, %p35
      %p37 = scmp.ne.s32.totalorder %s29, %s32
      %p38 = scmp.eq.s32.totalorder %s19, 0
      %p39 = por %p37, %p38
      %p40 = scmp.ne.s32.totalorder %s29, %s32
      %p41 = scmp.eq.s32.totalorder %s24, 2
      %p42 = por %p40, %p41
      %p43 = scmp.ne.s32.totalorder %s32, %s33
      %p44 = scmp.eq.s32.totalorder %s24, 0
      %p45 = por %p43, %p44
      %p46 = scmp.ne.s32.totalorder %s32, %s33
      %p47 = scmp.eq.s32.totalorder %s25, 2
      %p48 = por %p46, %p47
      %p50 = scmp.ne.s32.totalorder %s33, %s49
      %p51 = scmp.eq.s32.totalorder %s25, 0
      %p52 = por %p50, %p51
      %s54 = sadd.s32 %s53, 1
      %p57 = scmp.eq.s32.totalorder %s19, 2
      %p58 = scmp.ne.s32.totalorder %s53, %s55
      %p59 = scmp.eq.s32.totalorder %s19, 0
      %p60 = por %p58, %p59
      %p61 = scmp.ne.s32.totalorder %s53, %s55
      %p62 = scmp.eq.s32.totalorder %s24, 2
      %p63 = por %p61, %p62
      %p64 = scmp.ne.s32.totalorder %s55, %s56
      %p65 = scmp.eq.s32.totalorder %s24, 0
      %p66 = por %p64, %p65
      %p67 = scmp.ne.s32.totalorder %s55, %s56
      %p68 = scmp.eq.s32.totalorder %s25, 2
      %p69 = por %p67, %p68
      %p71 = scmp.ne.s32.totalorder %s56, %s70
      %p72 = scmp.eq.s32.totalorder %s25, 0
      %p73 = por %p71, %p72
      %s75 = sadd.s32 %s74, 1
      %p78 = scmp.eq.s32.totalorder %s19, 2
      %p79 = scmp.ne.s32.totalorder %s74, %s76
      %p80 = scmp.eq.s32.totalorder %s19, 0
      %p81 = por %p79, %p80
      %p82 = scmp.ne.s32.totalorder %s74, %s76
      %p83 = scmp.eq.s32.totalorder %s24, 2
      %p84 = por %p82, %p83
      %p85 = scmp.ne.s32.totalorder %s76, %s77
      %p86 = scmp.eq.s32.totalorder %s24, 0
      %p87 = por %p85, %p86
      %p88 = scmp.ne.s32.totalorder %s76, %s77
      %p89 = scmp.eq.s32.totalorder %s25, 2
      %p90 = por %p88, %p89
      %p92 = scmp.ne.s32.totalorder %s77, %s91
      %p93 = scmp.eq.s32.totalorder %s25, 0
      %p94 = por %p92, %p93
      %s96 = sadd.s32 %s95, 1
      %p99 = scmp.eq.s32.totalorder %s19, 2
      %p100 = scmp.ne.s32.totalorder %s95, %s97
      %p101 = scmp.eq.s32.totalorder %s19, 0
      %p102 = por %p100, %p101
      %p103 = scmp.ne.s32.totalorder %s95, %s97
      %p104 = scmp.eq.s32.totalorder %s24, 2
      %p105 = por %p103, %p104
      %p106 = scmp.ne.s32.totalorder %s97, %s98
      %p107 = scmp.eq.s32.totalorder %s24, 0
      %p108 = por %p106, %p107
      %p109 = scmp.ne.s32.totalorder %s97, %s98
      %p110 = scmp.eq.s32.totalorder %s25, 2
      %p111 = por %p109, %p110
      %p113 = scmp.ne.s32.totalorder %s98, %s112
      %p114 = scmp.eq.s32.totalorder %s25, 0
      %p115 = por %p113, %p114
      %s116 = ssub.s32 %s19, %s26
      %p117 = scmp.eq.s32.totalorder %s116, 0
      %s119 = sadd.s32 %s118, 1
      %s120 = scalar_select %p117, %s118, %s119
      %p123 = pneg %p117
      %p124 = scmp.eq.s32.totalorder %s19, 2
      %p125 = por %p123, %p124
      %p126 = scmp.ne.s32.totalorder %s118, %s121
      %p127 = scmp.eq.s32.totalorder %s19, 0
      %p128 = por %p126, %p127
      %p129 = scmp.ne.s32.totalorder %s118, %s121
      %p130 = scmp.eq.s32.totalorder %s24, 2
      %p131 = por %p129, %p130
      %p132 = scmp.ne.s32.totalorder %s121, %s122
      %p133 = scmp.eq.s32.totalorder %s24, 0
      %p134 = por %p132, %p133
      %p135 = scmp.ne.s32.totalorder %s121, %s122
      %p136 = scmp.eq.s32.totalorder %s25, 2
      %p137 = por %p135, %p136
      %p139 = scmp.ne.s32.totalorder %s122, %s138
      %p140 = scmp.eq.s32.totalorder %s25, 0
      %p141 = por %p139, %p140
      %p142 = scmp.le.s32.totalorder 1, %s19
      %p143 = scmp.lt.s32.totalorder %s19, 4
      %p144 = pnand %p142, %p143
      %p145 = pneg %p144
      // Predicated region
      $region9: #{tpu_custom_call.1} parent=5 // pred_check
        _
      $region10: #{tpu_custom_call.1} parent=5 // pred_check_branch
        %147 = sbr.rel (%p144) target = $region12
      $region11: #{tpu_custom_call.1} parent=5 // pred_region
        %s148 = ssub.s32 %s19, 1
        // Predicated region
        $region13: #{tpu_custom_call.1} parent=11 // pred_check
          %p149 = pneg %p66
        $region14: #{tpu_custom_call.1} parent=11 // pred_check_branch
          %151 = sbr.rel (%p149) target = $region16
        $region15: #{tpu_custom_call.1} parent=11 // pred_region
          %s153 = ssub.s32 16, 16
          %154 = vsyncadd [#allocation6], %s153
          %s156 = sshll.u32 %s1, 4
          %s157 = int_to_ptr.vmem [resolvable:$true] %s156
          %159 = dma.vmem_to_smem %s157, 16, [#allocation7], [#allocation6]
        $region16: #{tpu_custom_call.1} parent=11 // pred_fallthru
          _
        // Predicated region
        $region17: #{tpu_custom_call.1} parent=11 // pred_check
          %p160 = pneg %p87
        $region18: #{tpu_custom_call.1} parent=11 // pred_check_branch
          %162 = sbr.rel (%p160) target = $region20
        $region19: #{tpu_custom_call.1} parent=11 // pred_region
          %s164 = ssub.s32 16, 16
          %165 = vsyncadd [#allocation9], %s164
          %s167 = sshll.u32 %s2, 4
          %s168 = int_to_ptr.vmem [resolvable:$true] %s167
          %170 = dma.vmem_to_smem %s168, 16, [#allocation8], [#allocation9]
        $region20: #{tpu_custom_call.1} parent=11 // pred_fallthru
          _
        // Predicated region
        $region21: #{tpu_custom_call.1} parent=11 // pred_check
          %p171 = pneg %p108
        $region22: #{tpu_custom_call.1} parent=11 // pred_check_branch
          %173 = sbr.rel (%p171) target = $region24
        $region23: #{tpu_custom_call.1} parent=11 // pred_region
          _
        $region24: #{tpu_custom_call.1} parent=11 // pred_fallthru
          _
      $region12: #{tpu_custom_call.1} parent=5 // pred_fallthru
        _
      %p174 = scmp.lt.s32.totalorder %s19, 3
      // Predicated region
      $region25: #{tpu_custom_call.1} parent=5 // pred_check
        %p175 = pneg %p174
      $region26: #{tpu_custom_call.1} parent=5 // pred_check_branch
        %177 = sbr.rel (%p175) target = $region28
      $region27: #{tpu_custom_call.1} parent=5 // pred_region
        // Predicated region
        $region29: #{tpu_custom_call.1} parent=27 // pred_check
          %p178 = pneg %p39
        $region30: #{tpu_custom_call.1} parent=27 // pred_check_branch
          %180 = sbr.rel (%p178) target = $region32
        $region31: #{tpu_custom_call.1} parent=27 // pred_region
          %s181 = sand.u32 %s29, 1
          %s182 = scalar_lea.sflag [#allocation4], %s181
          %s183 = sand.u32 %s29, 1
          %s184 = smul.addr %s183, 72
          %s185 = scalar_lea.vmem [#allocation3], %s184
          %s186 = smul.u32 9, %s19
          %s187 = ssub.s32 20, %s186
          %p188 = scmp.lt.s32.totalorder %s187, 9
          %s189 = scalar_select %p188, %s187, 9
          %s190 = smul.u32 128, %s189
          %s192 = ssub.s32 1152, %s190
          %193 = vsyncadd %s182, %s192
          %p194 = scmp.ne.s32.totalorder 0, %s190
          %s195 = smul.addr %s186, 128
          %s196 = scalar_lea.hbm %s0, %s195
          %s197 = smul.u32 8, %s189
          %s198 = sshll.u32 %s185, 4
          %s199 = int_to_ptr.vmem [resolvable:$true] %s198
          %s200 = sshll.u32 %s197, 4
          %204 = dma.hbm_to_vmem [thread:$0]  (%p194), %s196, %s200, %s199, %s182, 128, 128, 8
        $region32: #{tpu_custom_call.1} parent=27 // pred_fallthru
          _
      $region28: #{tpu_custom_call.1} parent=5 // pred_fallthru
        _
      %p205 = scmp.le.s32.totalorder 1, %s19
      %p206 = scmp.lt.s32.totalorder %s19, 4
      %p207 = pnand %p205, %p206
      %p208 = pneg %p207
      // Predicated region
      $region33: #{tpu_custom_call.1} parent=5 // pred_check
        _
      $region34: #{tpu_custom_call.1} parent=5 // pred_check_branch
        %210 = sbr.rel (%p207) target = $region36
      $region35: #{tpu_custom_call.1} parent=5 // pred_region
        %s211 = ssub.s32 %s19, 1
        %s212 = sand.u32 %s32, 1
        %s213 = scalar_lea.sflag [#allocation4], %s212
        %s214 = sand.u32 %s32, 1
        %s215 = smul.addr %s214, 72
        %s216 = scalar_lea.vmem [#allocation3], %s215
        // Predicated region
        $region37: #{tpu_custom_call.1} parent=35 // pred_check
          %p217 = pneg %p45
        $region38: #{tpu_custom_call.1} parent=35 // pred_check_branch
          %219 = sbr.rel (%p217) target = $region40
        $region39: #{tpu_custom_call.1} parent=35 // pred_region
          %220 = dma.done %s213, 1152
        $region40: #{tpu_custom_call.1} parent=35 // pred_fallthru
          _
        // Predicated region
        $region41: #{tpu_custom_call.1} parent=35 // pred_check
          %p221 = pneg %p66
        $region42: #{tpu_custom_call.1} parent=35 // pred_check_branch
          %223 = sbr.rel (%p221) target = $region44
        $region43: #{tpu_custom_call.1} parent=35 // pred_region
          %224 = dma.done [#allocation6], 16
        $region44: #{tpu_custom_call.1} parent=35 // pred_fallthru
          _
        // Predicated region
        $region45: #{tpu_custom_call.1} parent=35 // pred_check
          %p225 = pneg %p87
        $region46: #{tpu_custom_call.1} parent=35 // pred_check_branch
          %227 = sbr.rel (%p225) target = $region48
        $region47: #{tpu_custom_call.1} parent=35 // pred_region
          %228 = dma.done [#allocation9], 16
        $region48: #{tpu_custom_call.1} parent=35 // pred_fallthru
          _
        %229 = sfence
        %s230 = sand.u32 %s32, 1
        %s231 = scalar_lea.sflag [#allocation4], %s230
        %s232 = sand.u32 %s32, 1
        %s233 = smul.addr %s232, 72
        %s234 = scalar_lea.vmem [#allocation3], %s233
        %p235 = pneg %p45
        %p236 = pneg %p42
        %p237 = pneg %p66
        %p238 = pneg %p63
        %p239 = pneg %p87
        %p240 = pneg %p84
        %p241 = pneg %p108
        %p242 = pneg %p105
        %p243 = pneg %p134
        %p244 = pneg %p131
        %s245 = sand.u32 %s121, 1
        %s246 = scalar_lea.sflag [#allocation5], %s245
        %s247 = sand.u32 %s121, 1
        %s248 = smul.addr %s247, 72
        %s249 = scalar_lea.vmem [#allocation10], %s248
        %s250 = smul.u32 9, %s24
        %s251 = ssub.s32 20, %s250
        %p252 = scmp.lt.s32.totalorder %s251, 9
        %s253 = scalar_select %p252, %s251, 9
        %s254 = smul.u32 128, %s253
        %s255 = smul.u32 9, %s24
        %s256 = ssub.s32 20, %s255
        %p257 = scmp.lt.s32.totalorder %s256, 9
        %s258 = scalar_select %p257, %s256, 9
        %s259 = smul.u32 128, %s258
        %v260 = vld [vmem:[%s216] sm:$0xff]
        %v261 = vld [vmem:[%s216 + $0x8] sm:$0xff]
        %v262 = vld [vmem:[%s216 + $0x10] sm:$0xff]
        %v263 = vld [vmem:[%s216 + $0x18] sm:$0xff]
        %v264 = vld [vmem:[%s216 + $0x20] sm:$0xff]
        %v265 = vld [vmem:[%s216 + $0x28] sm:$0xff]
        %v266 = vld [vmem:[%s216 + $0x30] sm:$0xff]
        %v267 = vld [vmem:[%s216 + $0x38] sm:$0xff]
        %v268 = vld [vmem:[%s216 + $0x40] sm:$0xff]
        %s269 = sld [smem:[#allocation2]]
        %v270 = vstv %s269
        %s271 = sld [smem:[#allocation8]]
        %s272 = sld [smem:[#allocation7]]
        %v273 = vstv %s272
        %v274 = vmul.f32 %v273, %v260
        %v275 = vmul.f32 %v273, %v261
        %v276 = vmul.f32 %v273, %v262
        %v277 = vmul.f32 %v273, %v263
        %v278 = vmul.f32 %v273, %v264
        %v279 = vmul.f32 %v273, %v265
        %v280 = vmul.f32 %v273, %v266
        %v281 = vmul.f32 %v273, %v267
        %v282 = vmul.f32 %v273, %v268
        %v283 = vtanh.pop %v274
        %v284 = vtanh.pop %v275
        %v285 = vtanh.pop %v276
        %v286 = vtanh.pop %v277
        %v287 = vtanh.pop %v278
        %v288 = vtanh.pop %v279
        %v289 = vtanh.pop %v280
        %v290 = vtanh.pop %v281
        %v291 = vtanh.pop %v282
        %v292 = vstv %s271
        %v293 = vmul.f32 %v292, %v283
        %v294 = vmul.f32 %v292, %v284
        %v295 = vmul.f32 %v292, %v285
        %v296 = vmul.f32 %v292, %v286
        %v297 = vmul.f32 %v292, %v287
        %v298 = vmul.f32 %v292, %v288
        %v299 = vmul.f32 %v292, %v289
        %v300 = vmul.f32 %v292, %v290
        %v301 = vmul.f32 %v292, %v291
        %v302 = vadd.f32 %v270, %v293
        %v303 = vadd.f32 %v270, %v294
        %v304 = vadd.f32 %v270, %v295
        %v305 = vadd.f32 %v270, %v296
        %v306 = vadd.f32 %v270, %v297
        %v307 = vadd.f32 %v270, %v298
        %v308 = vadd.f32 %v270, %v299
        %v309 = vadd.f32 %v270, %v300
        %v310 = vadd.f32 %v270, %v301
        %s311 = sld [smem:[#allocation8 + $0x1]]
        %s312 = sld [smem:[#allocation7 + $0x1]]
        %v313 = vstv %s312
        %v314 = vmul.f32 %v313, %v260
        %v315 = vmul.f32 %v313, %v261
        %v316 = vmul.f32 %v313, %v262
        %v317 = vmul.f32 %v313, %v263
        %v318 = vmul.f32 %v313, %v264
        %v319 = vmul.f32 %v313, %v265
        %v320 = vmul.f32 %v313, %v266
        %v321 = vmul.f32 %v313, %v267
        %v322 = vmul.f32 %v313, %v268
        %v323 = vtanh.pop %v314
        %v324 = vtanh.pop %v315
        %v325 = vtanh.pop %v316
        %v326 = vtanh.pop %v317
        %v327 = vtanh.pop %v318
        %v328 = vtanh.pop %v319
        %v329 = vtanh.pop %v320
        %v330 = vtanh.pop %v321
        %v331 = vtanh.pop %v322
        %v332 = vstv %s311
        %v333 = vmul.f32 %v332, %v323
        %v334 = vmul.f32 %v332, %v324
        %v335 = vmul.f32 %v332, %v325
        %v336 = vmul.f32 %v332, %v326
        %v337 = vmul.f32 %v332, %v327
        %v338 = vmul.f32 %v332, %v328
        %v339 = vmul.f32 %v332, %v329
        %v340 = vmul.f32 %v332, %v330
        %v341 = vmul.f32 %v332, %v331
        %v342 = vadd.f32 %v302, %v333
        %v343 = vadd.f32 %v303, %v334
        %v344 = vadd.f32 %v304, %v335
        %v345 = vadd.f32 %v305, %v336
        %v346 = vadd.f32 %v306, %v337
        %v347 = vadd.f32 %v307, %v338
        %v348 = vadd.f32 %v308, %v339
        %v349 = vadd.f32 %v309, %v340
        %v350 = vadd.f32 %v310, %v341
        %s351 = sld [smem:[#allocation8 + $0x2]]
        %s352 = sld [smem:[#allocation7 + $0x2]]
        %v353 = vstv %s352
        %v354 = vmul.f32 %v353, %v260
        %v355 = vmul.f32 %v353, %v261
        %v356 = vmul.f32 %v353, %v262
        %v357 = vmul.f32 %v353, %v263
        %v358 = vmul.f32 %v353, %v264
        %v359 = vmul.f32 %v353, %v265
        %v360 = vmul.f32 %v353, %v266
        %v361 = vmul.f32 %v353, %v267
        %v362 = vmul.f32 %v353, %v268
        %v363 = vtanh.pop %v354
        %v364 = vtanh.pop %v355
        %v365 = vtanh.pop %v356
        %v366 = vtanh.pop %v357
        %v367 = vtanh.pop %v358
        %v368 = vtanh.pop %v359
        %v369 = vtanh.pop %v360
        %v370 = vtanh.pop %v361
        %v371 = vtanh.pop %v362
        %v372 = vstv %s351
        %v373 = vmul.f32 %v372, %v363
        %v374 = vmul.f32 %v372, %v364
        %v375 = vmul.f32 %v372, %v365
        %v376 = vmul.f32 %v372, %v366
        %v377 = vmul.f32 %v372, %v367
        %v378 = vmul.f32 %v372, %v368
        %v379 = vmul.f32 %v372, %v369
        %v380 = vmul.f32 %v372, %v370
        %v381 = vmul.f32 %v372, %v371
        %v382 = vadd.f32 %v342, %v373
        %v383 = vadd.f32 %v343, %v374
        %v384 = vadd.f32 %v344, %v375
        %v385 = vadd.f32 %v345, %v376
        %v386 = vadd.f32 %v346, %v377
        %v387 = vadd.f32 %v347, %v378
        %v388 = vadd.f32 %v348, %v379
        %v389 = vadd.f32 %v349, %v380
        %v390 = vadd.f32 %v350, %v381
        %391 = vst [vmem:[%s249] sm:$0xff] %v382
        %392 = vst [vmem:[%s249 + $0x8] sm:$0xff] %v383
        %393 = vst [vmem:[%s249 + $0x10] sm:$0xff] %v384
        %394 = vst [vmem:[%s249 + $0x18] sm:$0xff] %v385
        %395 = vst [vmem:[%s249 + $0x20] sm:$0xff] %v386
        %396 = vst [vmem:[%s249 + $0x28] sm:$0xff] %v387
        %397 = vst [vmem:[%s249 + $0x30] sm:$0xff] %v388
        %398 = vst [vmem:[%s249 + $0x38] sm:$0xff] %v389
        %399 = vst [vmem:[%s249 + $0x40] sm:$0xff] %v390
        %s400 = sand.u32 %s121, 1
        %s401 = scalar_lea.sflag [#allocation5], %s400
        %s402 = sand.u32 %s121, 1
        %s403 = smul.addr %s402, 72
        %s404 = scalar_lea.vmem [#allocation10], %s403
        // Predicated region
        $region49: #{tpu_custom_call.1} parent=35 // pred_check
          %p405 = pneg %p131
        $region50: #{tpu_custom_call.1} parent=35 // pred_check_branch
          %407 = sbr.rel (%p405) target = $region52
        $region51: #{tpu_custom_call.1} parent=35 // pred_region
          %s408 = smul.u32 9, %s24
          %s409 = ssub.s32 20, %s408
          %p410 = scmp.lt.s32.totalorder %s409, 9
          %s411 = scalar_select %p410, %s409, 9
          %s412 = smul.u32 128, %s411
          %s414 = ssub.s32 1152, %s412
          %415 = vsyncadd %s401, %s414
          %p416 = scmp.ne.s32.totalorder 0, %s412
          %s417 = smul.addr %s408, 128
          %s418 = scalar_lea.hbm %s4, %s417
          %s419 = smul.u32 8, %s411
          %s420 = sshll.u32 %s404, 4
          %s421 = int_to_ptr.vmem [resolvable:$true] %s420
          %s422 = sshll.u32 %s419, 4
          %426 = dma.vmem_to_hbm [thread:$0]  (%p416), %s421, %s422, %s418, %s401, 128, 128, 8
        $region52: #{tpu_custom_call.1} parent=35 // pred_fallthru
          _
      $region36: #{tpu_custom_call.1} parent=5 // pred_fallthru
        _
      %p427 = scmp.le.s32.totalorder 2, %s19
      // Predicated region
      $region53: #{tpu_custom_call.1} parent=5 // pred_check
        %p428 = pneg %p427
      $region54: #{tpu_custom_call.1} parent=5 // pred_check_branch
        %430 = sbr.rel (%p428) target = $region56
      $region55: #{tpu_custom_call.1} parent=5 // pred_region
        %s431 = ssub.s32 %s19, 2
        // Predicated region
        $region57: #{tpu_custom_call.1} parent=55 // pred_check
          %p432 = pneg %p137
        $region58: #{tpu_custom_call.1} parent=55 // pred_check_branch
          %434 = sbr.rel (%p432) target = $region60
        $region59: #{tpu_custom_call.1} parent=55 // pred_region
          %s435 = sand.u32 %s122, 1
          %s436 = scalar_lea.sflag [#allocation5], %s435
          %s437 = sand.u32 %s122, 1
          %s438 = smul.addr %s437, 72
          %s439 = scalar_lea.vmem [#allocation10], %s438
          %440 = dma.done %s436, 1152
        $region60: #{tpu_custom_call.1} parent=55 // pred_fallthru
          _
      $region56: #{tpu_custom_call.1} parent=5 // pred_fallthru
        _
    $region6: #{tpu_custom_call.1} parent=1 // loop_footer
      %s23 = sadd.s32 1, %s19
    $region7: #{tpu_custom_call.1} parent=1 // loop_footer_branch
      %18 = sbr.rel target = $region3
    $region8: #{tpu_custom_call.1} parent=1 // loop_exit
      _
    %441 = vsyncpa [#allocation4], 1
    %s442 = scalar_lea.sflag [#allocation4], 1
    %443 = vsyncpa %s442, 1
    %444 = vsyncpa [#allocation5], 1
    %s445 = scalar_lea.sflag [#allocation5], 1
    %446 = vsyncpa %s445, 1
    %447 = vsyncpa [#allocation6], 1
    %s448 = scalar_lea.sflag [#allocation6], 1
    %449 = vsyncpa %s448, 1
    %450 = vsyncpa [#allocation9], 1

</llo_original>
